<compile_context>
chip_gen: v6e
topology: v6e:2x2x1
jax: 0.10.0
libtpu: 0.0.40
codegen_flags: <defaults>
</compile_context>

<pallas_src>
import jax
import jax.numpy as jnp
from jax.experimental import pallas as pl
from jax.experimental.pallas import tpu as pltpu


_NUM_FEATURES = 10   # raw input columns (column 1 holds the categorical index)
_GROUP = 16          # batch rows packed onto the lane axis of one reshaped row
_HID = 8             # padded hidden width (8, 8, 5->8)


def _round_up(n, m):
    return ((n + m - 1) // m) * m


def _cdiv(a, b):
    return -(-a // b)


def mlp_kernel(x_ref, w1_ref, b1_ref, w2_ref, b2_ref, w3_ref, b3_ref,
               w4_ref, b4_ref, o_ref):
    # x_ref: (TBR, 160) f32 -- 16 batch rows per sublane-row, feature-major on lanes.
    x = x_ref[...]
    h = jnp.maximum(
        jnp.dot(x, w1_ref[...], preferred_element_type=jnp.float32) + b1_ref[...], 0.0)
    h = jnp.maximum(
        jnp.dot(h, w2_ref[...], preferred_element_type=jnp.float32) + b2_ref[...], 0.0)
    h = jnp.maximum(
        jnp.dot(h, w3_ref[...], preferred_element_type=jnp.float32) + b3_ref[...], 0.0)
    y = jnp.dot(h, w4_ref[...], preferred_element_type=jnp.float32) + b4_ref[...]
    o_ref[...] = y.astype(o_ref.dtype)          # (TBR, 16)


def pack_params(params, group=_GROUP):
    """Fold the embedding into layer 1, zero-pad hidden widths to 8, and expand
    every layer into a block-diagonal weight (kron with I_group) so that the
    kernel can process `group` batch rows per reshaped row with plain matmuls.
    Exact for categorical values in {0, 1} (the only valid Embedding(2) inputs)."""
    emb, w1, b1, w2, b2, w3, b3, w4, b4 = params

    # --- embedding fold: x_cat enters layer 1 linearly ---
    w1_cat = w1[1:4, :]                                            # (3, 8)
    w1_eff = jnp.concatenate(
        [w1[0:1, :],                                               # feature 0
         ((emb[1] - emb[0]) @ w1_cat)[None, :],                    # categorical col
         w1[4:12, :]], axis=0)                                     # features 2..9
    b1_eff = b1 + emb[0] @ w1_cat                                  # (1, 8)

    # --- zero-pad narrow layers to width 8 (exact through the ReLUs) ---
    w3p = jnp.pad(w3, ((0, 0), (0, _HID - 5)))                     # (8, 8)
    b3p = jnp.pad(b3, ((0, 0), (0, _HID - 5)))                     # (1, 8)
    w4p = jnp.pad(w4, ((0, _HID - 5), (0, 0)))                     # (8, 1)

    # --- block-diagonal expansion over the batch group ---
    eye = jnp.eye(group, dtype=jnp.float32)
    return (
        jnp.kron(eye, w1_eff),            # (160, 128)
        jnp.tile(b1_eff, (1, group)),     # (1, 128)
        jnp.kron(eye, w2),                # (128, 128)
        jnp.tile(b2, (1, group)),         # (1, 128)
        jnp.kron(eye, w3p),               # (128, 128)
        jnp.tile(b3p, (1, group)),        # (1, 128)
        jnp.kron(eye, w4p),               # (128, 16)
        jnp.tile(b4, (1, group)),         # (1, 16)
    )


def model_forward(x, params, tbr=1024):
    """x: (B, 10) float32 -> (B, 1) float32."""
    B, F = x.shape
    assert F == _NUM_FEATURES
    packed = pack_params(params)

    # Adaptive batch tiling: G group-rows (each = 16 batch rows), G = n * TBR
    # with TBR a multiple of 8, so padding is bounded to ~1% for large B and is
    # zero (no host copy at all) when B is already a multiple of the granule.
    tbr = max(8, (tbr // 8) * 8)
    G1 = _round_up(max(1, _cdiv(B, _GROUP)), 8)
    n = _cdiv(G1, tbr)
    TBR = _round_up(_cdiv(G1, n), 8)
    G = n * TBR
    B_pad = G * _GROUP

    # Free when B_pad == B: pad elides, reshape is a bitcast of row-major x.
    xg = jnp.pad(x, ((0, B_pad - B), (0, 0))).reshape(G, _GROUP * F)   # (G, 160)

    in_specs = [pl.BlockSpec((TBR, _GROUP * F), lambda i: (i, 0))]     # pipelined x
    in_specs += [pl.BlockSpec(p.shape, lambda i: (0, 0)) for p in packed]  # resident

    flops = 2 * G * (_GROUP * F * _GROUP * _HID            # layer 1
                     + 2 * (_GROUP * _HID) ** 2            # layers 2, 3
                     + _GROUP * _HID * _GROUP)             # layer 4
    bytes_accessed = 4 * (G * _GROUP * F + G * _GROUP
                          + sum(int(p.size) for p in packed))

    yg = pl.pallas_call(
        mlp_kernel,
        out_shape=jax.ShapeDtypeStruct((G, _GROUP), jnp.float32),
        grid_spec=pl.GridSpec(
            grid=(n,),
            in_specs=in_specs,
            out_specs=pl.BlockSpec((TBR, _GROUP), lambda i: (i, 0)),
        ),
        compiler_params=pltpu.CompilerParams(
            dimension_semantics=("parallel",)),
        cost_estimate=pl.CostEstimate(
            flops=flops, transcendentals=0, bytes_accessed=bytes_accessed),
    )(xg, *packed)

    return yg.reshape(B_pad, 1)[:B]                                    # (B, 1)


def init_params(key):
    """Deterministic init mimicking PyTorch defaults (uniform +-1/sqrt(fan_in),
    embedding ~ N(0, 1)). Weights stored as (in_features, out_features)."""
    ks = jax.random.split(key, 9)

    def linear(kw, kb, fan_in, fan_out):
        bound = 1.0 / jnp.sqrt(jnp.float32(fan_in))
        w = jax.random.uniform(kw, (fan_in, fan_out), jnp.float32, -bound, bound)
        b = jax.random.uniform(kb, (1, fan_out), jnp.float32, -bound, bound)
        return w, b

    emb = jax.random.normal(ks[0], (2, 3), jnp.float32)
    w1, b1 = linear(ks[1], ks[2], 12, 8)
    w2, b2 = linear(ks[3], ks[4], 8, 8)
    w3, b3 = linear(ks[5], ks[6], 8, 5)
    w4, b4 = linear(ks[7], ks[8], 5, 1)
    return (emb, w1, b1, w2, b2, w3, b3, w4, b4)


def reference_forward(x, params):
    """Pure-JAX reference reproducing the PyTorch forward exactly."""
    emb, w1, b1, w2, b2, w3, b3, w4, b4 = params
    idx = x[:, 1].astype(jnp.int32)                                   # (B,)
    cat_emb = emb[idx]                                                # (B, 3)
    x_emb = jnp.concatenate([x[:, :1], cat_emb, x[:, 2:]], axis=1)    # (B, 12)
    h = jax.nn.relu(x_emb @ w1 + b1)
    h = jax.nn.relu(h @ w2 + b2)
    h = jax.nn.relu(h @ w3 + b3)
    return h @ w4 + b4


if __name__ == "__main__":
    key = jax.random.PRNGKey(0)
    k_params, k_data = jax.random.split(key)
    params = init_params(k_params)

    fwd = jax.jit(model_forward, static_argnames=("tbr",))

    # Small case (B=8) plus a non-aligned multi-tile case (grid > 1, padding).
    for B, tbr in ((8, 1024), (4101, 128)):
        kf, kc = jax.random.split(jax.random.fold_in(k_data, B))
        x = jax.random.normal(kf, (B, _NUM_FEATURES), jnp.float32)
        cat_col = jax.random.randint(kc, (B,), 0, 2).astype(jnp.float32)
        x = x.at[:, 1].set(cat_col)

        y = jax.block_until_ready(fwd(x, params, tbr=tbr))
        y_ref = reference_forward(x, params)
        assert y.shape == (B, 1)
        assert jnp.allclose(y, y_ref, atol=1e-4, rtol=1e-4), (
            f"mismatch vs reference at B={B}: "
            f"max_abs_err={float(jnp.max(jnp.abs(y - y_ref)))}")

    print("KERNEL_OK")
</pallas_src>

<mosaic_0001>
module attributes {stable_mosaic.version = 11 : i64} {
  func.func @mlp_kernel(%arg0: i32, %arg1: memref<8x160xf32, #tpu.memory_space<vmem>>, %arg2: memref<160x128xf32, #tpu.memory_space<vmem>>, %arg3: memref<1x128xf32, #tpu.memory_space<vmem>>, %arg4: memref<128x128xf32, #tpu.memory_space<vmem>>, %arg5: memref<1x128xf32, #tpu.memory_space<vmem>>, %arg6: memref<128x128xf32, #tpu.memory_space<vmem>>, %arg7: memref<1x128xf32, #tpu.memory_space<vmem>>, %arg8: memref<128x16xf32, #tpu.memory_space<vmem>>, %arg9: memref<1x16xf32, #tpu.memory_space<vmem>>, %arg10: memref<8x16xf32, #tpu.memory_space<vmem>>) attributes {dimension_semantics = [#tpu.dimension_semantics<parallel>], iteration_bounds = array<i64: 1>, scalar_prefetch = 0 : i64, scratch_operands = 0 : i64, tpu.core_type = #tpu.core_type<tc>, window_params = [{transform_indices = @transform_0, window_bounds = array<i64: 8, 160>}, {pipeline_mode = #tpu.pipeline_mode<synchronous>, transform_indices = @transform_1, window_bounds = array<i64: 160, 128>}, {pipeline_mode = #tpu.pipeline_mode<synchronous>, transform_indices = @transform_2, window_bounds = array<i64: 1, 128>}, {pipeline_mode = #tpu.pipeline_mode<synchronous>, transform_indices = @transform_3, window_bounds = array<i64: 128, 128>}, {pipeline_mode = #tpu.pipeline_mode<synchronous>, transform_indices = @transform_4, window_bounds = array<i64: 1, 128>}, {pipeline_mode = #tpu.pipeline_mode<synchronous>, transform_indices = @transform_5, window_bounds = array<i64: 128, 128>}, {pipeline_mode = #tpu.pipeline_mode<synchronous>, transform_indices = @transform_6, window_bounds = array<i64: 1, 128>}, {pipeline_mode = #tpu.pipeline_mode<synchronous>, transform_indices = @transform_7, window_bounds = array<i64: 128, 16>}, {pipeline_mode = #tpu.pipeline_mode<synchronous>, transform_indices = @transform_8, window_bounds = array<i64: 1, 16>}, {transform_indices = @transform_9, window_bounds = array<i64: 8, 16>}]} {
    %c0 = arith.constant 0 : index
    %c0_0 = arith.constant 0 : index
    %0 = vector.load %arg1[%c0, %c0_0] : memref<8x160xf32, #tpu.memory_space<vmem>>, vector<8x160xf32>
    %c0_1 = arith.constant 0 : index
    %c0_2 = arith.constant 0 : index
    %1 = vector.load %arg2[%c0_1, %c0_2] : memref<160x128xf32, #tpu.memory_space<vmem>>, vector<160x128xf32>
    %cst = arith.constant dense<0.000000e+00> : vector<8x128xf32>
    %2 = tpu.matmul %0, %1, %cst {dimension_numbers = #tpu.dot_dimension_numbers<[1], [0], [0], [1], [0, 0, 1, 1], [], []>} : vector<8x160xf32>, vector<160x128xf32>, vector<8x128xf32> -> vector<8x128xf32>
    %c0_3 = arith.constant 0 : index
    %c0_4 = arith.constant 0 : index
    %3 = vector.load %arg3[%c0_3, %c0_4] : memref<1x128xf32, #tpu.memory_space<vmem>>, vector<1x128xf32>
    %4 = vector.broadcast %3 : vector<1x128xf32> to vector<8x128xf32>
    %5 = arith.addf %2, %4 : vector<8x128xf32>
    %cst_5 = arith.constant 0.000000e+00 : f32
    %6 = vector.broadcast %cst_5 : f32 to vector<8x128xf32>
    %7 = arith.maximumf %5, %6 : vector<8x128xf32>
    %c0_6 = arith.constant 0 : index
    %c0_7 = arith.constant 0 : index
    %8 = vector.load %arg4[%c0_6, %c0_7] : memref<128x128xf32, #tpu.memory_space<vmem>>, vector<128x128xf32>
    %cst_8 = arith.constant dense<0.000000e+00> : vector<8x128xf32>
    %9 = tpu.matmul %7, %8, %cst_8 {dimension_numbers = #tpu.dot_dimension_numbers<[1], [0], [0], [1], [0, 0, 1, 1], [], []>} : vector<8x128xf32>, vector<128x128xf32>, vector<8x128xf32> -> vector<8x128xf32>
    %c0_9 = arith.constant 0 : index
    %c0_10 = arith.constant 0 : index
    %10 = vector.load %arg5[%c0_9, %c0_10] : memref<1x128xf32, #tpu.memory_space<vmem>>, vector<1x128xf32>
    %11 = vector.broadcast %10 : vector<1x128xf32> to vector<8x128xf32>
    %12 = arith.addf %9, %11 : vector<8x128xf32>
    %cst_11 = arith.constant 0.000000e+00 : f32
    %13 = vector.broadcast %cst_11 : f32 to vector<8x128xf32>
    %14 = arith.maximumf %12, %13 : vector<8x128xf32>
    %c0_12 = arith.constant 0 : index
    %c0_13 = arith.constant 0 : index
    %15 = vector.load %arg6[%c0_12, %c0_13] : memref<128x128xf32, #tpu.memory_space<vmem>>, vector<128x128xf32>
    %cst_14 = arith.constant dense<0.000000e+00> : vector<8x128xf32>
    %16 = tpu.matmul %14, %15, %cst_14 {dimension_numbers = #tpu.dot_dimension_numbers<[1], [0], [0], [1], [0, 0, 1, 1], [], []>} : vector<8x128xf32>, vector<128x128xf32>, vector<8x128xf32> -> vector<8x128xf32>
    %c0_15 = arith.constant 0 : index
    %c0_16 = arith.constant 0 : index
    %17 = vector.load %arg7[%c0_15, %c0_16] : memref<1x128xf32, #tpu.memory_space<vmem>>, vector<1x128xf32>
    %18 = vector.broadcast %17 : vector<1x128xf32> to vector<8x128xf32>
    %19 = arith.addf %16, %18 : vector<8x128xf32>
    %cst_17 = arith.constant 0.000000e+00 : f32
    %20 = vector.broadcast %cst_17 : f32 to vector<8x128xf32>
    %21 = arith.maximumf %19, %20 : vector<8x128xf32>
    %c0_18 = arith.constant 0 : index
    %c0_19 = arith.constant 0 : index
    %22 = vector.load %arg8[%c0_18, %c0_19] : memref<128x16xf32, #tpu.memory_space<vmem>>, vector<128x16xf32>
    %cst_20 = arith.constant dense<0.000000e+00> : vector<8x16xf32>
    %23 = tpu.matmul %21, %22, %cst_20 {dimension_numbers = #tpu.dot_dimension_numbers<[1], [0], [0], [1], [0, 0, 1, 1], [], []>} : vector<8x128xf32>, vector<128x16xf32>, vector<8x16xf32> -> vector<8x16xf32>
    %c0_21 = arith.constant 0 : index
    %c0_22 = arith.constant 0 : index
    %24 = vector.load %arg9[%c0_21, %c0_22] : memref<1x16xf32, #tpu.memory_space<vmem>>, vector<1x16xf32>
    %25 = vector.broadcast %24 : vector<1x16xf32> to vector<8x16xf32>
    %26 = arith.addf %23, %25 : vector<8x16xf32>
    %c0_23 = arith.constant 0 : index
    %c0_24 = arith.constant 0 : index
    %27 = vector.load %arg10[%c0_23, %c0_24] : memref<8x16xf32, #tpu.memory_space<vmem>>, vector<8x16xf32>
    tpu.vector_store %arg10[%c0_23, %c0_24], %26 {strides = array<i32>} : memref<8x16xf32, #tpu.memory_space<vmem>>, vector<8x16xf32>,
    return
  }
  func.func @transform_0(%arg0: i32) -> (i32, i32) {
    %c0_i32 = arith.constant 0 : i32
    %c0_i32_0 = arith.constant 0 : i32
    return %arg0, %c0_i32 : i32, i32
  }
  func.func @transform_1(%arg0: i32) -> (i32, i32) {
    %c0_i32 = arith.constant 0 : i32
    %c0_i32_0 = arith.constant 0 : i32
    %c0_i32_1 = arith.constant 0 : i32
    return %c0_i32, %c0_i32_0 : i32, i32
  }
  func.func @transform_2(%arg0: i32) -> (i32, i32) {
    %c0_i32 = arith.constant 0 : i32
    %c0_i32_0 = arith.constant 0 : i32
    %c0_i32_1 = arith.constant 0 : i32
    return %c0_i32, %c0_i32_0 : i32, i32
  }
  func.func @transform_3(%arg0: i32) -> (i32, i32) {
    %c0_i32 = arith.constant 0 : i32
    %c0_i32_0 = arith.constant 0 : i32
    %c0_i32_1 = arith.constant 0 : i32
    return %c0_i32, %c0_i32_0 : i32, i32
  }
  func.func @transform_4(%arg0: i32) -> (i32, i32) {
    %c0_i32 = arith.constant 0 : i32
    %c0_i32_0 = arith.constant 0 : i32
    %c0_i32_1 = arith.constant 0 : i32
    return %c0_i32, %c0_i32_0 : i32, i32
  }
  func.func @transform_5(%arg0: i32) -> (i32, i32) {
    %c0_i32 = arith.constant 0 : i32
    %c0_i32_0 = arith.constant 0 : i32
    %c0_i32_1 = arith.constant 0 : i32
    return %c0_i32, %c0_i32_0 : i32, i32
  }
  func.func @transform_6(%arg0: i32) -> (i32, i32) {
    %c0_i32 = arith.constant 0 : i32
    %c0_i32_0 = arith.constant 0 : i32
    %c0_i32_1 = arith.constant 0 : i32
    return %c0_i32, %c0_i32_0 : i32, i32
  }
  func.func @transform_7(%arg0: i32) -> (i32, i32) {
    %c0_i32 = arith.constant 0 : i32
    %c0_i32_0 = arith.constant 0 : i32
    %c0_i32_1 = arith.constant 0 : i32
    return %c0_i32, %c0_i32_0 : i32, i32
  }
  func.func @transform_8(%arg0: i32) -> (i32, i32) {
    %c0_i32 = arith.constant 0 : i32
    %c0_i32_0 = arith.constant 0 : i32
    %c0_i32_1 = arith.constant 0 : i32
    return %c0_i32, %c0_i32_0 : i32, i32
  }
  func.func @transform_9(%arg0: i32) -> (i32, i32) {
    %c0_i32 = arith.constant 0 : i32
    %c0_i32_0 = arith.constant 0 : i32
    return %arg0, %c0_i32 : i32, i32
  }
}

</mosaic_0001>

<llo_original>
// kernel: model_forward.1
$region0: #{model_forward.1}
  #allocation0 [shape = 'u32[]', space=smem, size = 0x4, offset = 0x4, fixed_abs, tag = 'smem constant byte address 0x4 - core index']
  #allocation1 [shape = 'u32[144,128]{1,0:T(1,128)}', space=vmem, size = 0x12000, scoped, tag = 'internal scratch']
  %s0 = inlined_call_operand.vmem [shape: f32[8,160], index: 0, kind: input, shape index: {}]
  %s1 = inlined_call_operand.vmem [shape: f32[160,128], index: 1, kind: input, shape index: {}]
  %s2 = inlined_call_operand.vmem [shape: f32[1,128], index: 2, kind: input, shape index: {}]
  %s3 = inlined_call_operand.vmem [shape: f32[128,128], index: 3, kind: input, shape index: {}]
  %s4 = inlined_call_operand.vmem [shape: f32[1,128], index: 4, kind: input, shape index: {}]
  %s5 = inlined_call_operand.vmem [shape: f32[128,128], index: 5, kind: input, shape index: {}]
  %s6 = inlined_call_operand.vmem [shape: f32[1,128], index: 6, kind: input, shape index: {}]
  %s7 = inlined_call_operand.vmem [shape: f32[128,16], index: 7, kind: input, shape index: {}]
  %s8 = inlined_call_operand.vmem [shape: f32[1,16], index: 8, kind: input, shape index: {}]
  %s9 = inlined_call_operand.vmem [shape: f32[8,16], index: 9, kind: output, shape index: {}]
  %s10 = sld [smem:[#allocation0]]
  $region46: #{model_forward.1} parent=0
    _
  %s12 = ssub.s32 1, %s10
  %s13 = scalar_select 0, %s12, %s10
  // Predicated region
  $region2: #{model_forward.1} parent=0 // pred_check
    _
  $region3: #{model_forward.1} parent=0 // pred_check_branch
    %15 = sbr.rel (0) target = $region5
  $region4: #{model_forward.1} parent=0 // pred_region
    _
  $region5: #{model_forward.1} parent=0 // pred_fallthru
    _
  // Predicated region
  $region6: #{model_forward.1} parent=0 // pred_check
    _
  $region7: #{model_forward.1} parent=0 // pred_check_branch
    %17 = sbr.rel (0) target = $region9
  $region8: #{model_forward.1} parent=0 // pred_region
    _
  $region9: #{model_forward.1} parent=0 // pred_fallthru
    _
  // Predicated region
  $region10: #{model_forward.1} parent=0 // pred_check
    _
  $region11: #{model_forward.1} parent=0 // pred_check_branch
    %19 = sbr.rel (0) target = $region13
  $region12: #{model_forward.1} parent=0 // pred_region
    _
  $region13: #{model_forward.1} parent=0 // pred_fallthru
    _
  // Predicated region
  $region14: #{model_forward.1} parent=0 // pred_check
    _
  $region15: #{model_forward.1} parent=0 // pred_check_branch
    %21 = sbr.rel (0) target = $region17
  $region16: #{model_forward.1} parent=0 // pred_region
    _
  $region17: #{model_forward.1} parent=0 // pred_fallthru
    _
  // Predicated region
  $region18: #{model_forward.1} parent=0 // pred_check
    _
  $region19: #{model_forward.1} parent=0 // pred_check_branch
    %23 = sbr.rel (0) target = $region21
  $region20: #{model_forward.1} parent=0 // pred_region
    _
  $region21: #{model_forward.1} parent=0 // pred_fallthru
    _
  // Predicated region
  $region22: #{model_forward.1} parent=0 // pred_check
    _
  $region23: #{model_forward.1} parent=0 // pred_check_branch
    %25 = sbr.rel (0) target = $region25
  $region24: #{model_forward.1} parent=0 // pred_region
    _
  $region25: #{model_forward.1} parent=0 // pred_fallthru
    _
  // Predicated region
  $region26: #{model_forward.1} parent=0 // pred_check
    _
  $region27: #{model_forward.1} parent=0 // pred_check_branch
    %27 = sbr.rel (0) target = $region29
  $region28: #{model_forward.1} parent=0 // pred_region
    _
  $region29: #{model_forward.1} parent=0 // pred_fallthru
    _
  // Predicated region
  $region30: #{model_forward.1} parent=0 // pred_check
    _
  $region31: #{model_forward.1} parent=0 // pred_check_branch
    %29 = sbr.rel (0) target = $region33
  $region32: #{model_forward.1} parent=0 // pred_region
    _
  $region33: #{model_forward.1} parent=0 // pred_fallthru
    _
  // Predicated region
  $region34: #{model_forward.1} parent=0 // pred_check
    _
  $region35: #{model_forward.1} parent=0 // pred_check_branch
    %31 = sbr.rel (0) target = $region37
  $region36: #{model_forward.1} parent=0 // pred_region
    _
  $region37: #{model_forward.1} parent=0 // pred_fallthru
    _
  %v32 = vld [vmem:[%s0] sm:$0xff]
  %v33 = vld [vmem:[%s0 + $0x8] sm:$0xff]
  %v34 = vld [vmem:[%s1] sm:$0xff]
  %v35 = vld [vmem:[%s1 + $0x8] sm:$0xff]
  %v36 = vld [vmem:[%s1 + $0x10] sm:$0xff]
  %v37 = vld [vmem:[%s1 + $0x18] sm:$0xff]
  %v38 = vld [vmem:[%s1 + $0x20] sm:$0xff]
  %v39 = vld [vmem:[%s1 + $0x28] sm:$0xff]
  %v40 = vld [vmem:[%s1 + $0x30] sm:$0xff]
  %v41 = vld [vmem:[%s1 + $0x38] sm:$0xff]
  %v42 = vld [vmem:[%s1 + $0x40] sm:$0xff]
  %v43 = vld [vmem:[%s1 + $0x48] sm:$0xff]
  %v44 = vld [vmem:[%s1 + $0x50] sm:$0xff]
  %v45 = vld [vmem:[%s1 + $0x58] sm:$0xff]
  %v46 = vld [vmem:[%s1 + $0x60] sm:$0xff]
  %v47 = vld [vmem:[%s1 + $0x68] sm:$0xff]
  %v48 = vld [vmem:[%s1 + $0x70] sm:$0xff]
  %v49 = vld [vmem:[%s1 + $0x78] sm:$0xff]
  %v50 = vld [vmem:[%s1 + $0x80] sm:$0xff]
  %v51 = vld [vmem:[%s1 + $0x88] sm:$0xff]
  %v52 = vld [vmem:[%s1 + $0x90] sm:$0xff]
  %v53 = vld [vmem:[%s1 + $0x98] sm:$0xff]
  %v54 = vld [vmem:[%s2] sm:$0x1]
  %v56 = vlaneseq
  %v57 = vshrl.u32 %v56, 7
  %v58 = vsub.s32 0, %v57
  %v59 = vrot.slane %v54, %v58
  %vm61 = vcmask 261120
  %v63 = vsel %vm61, %v33, 0
  %65 = vmatprep.subr.mxu0 0.0
  %66 = vmatpush1.msra.mxu0 %v49
  %67 = vmatprep.subr.mxu0 0.0
  %68 = vmatpush1.msra.mxu0 %v48
  %69 = vmatprep.subr.mxu0 0.0
  %70 = vmatpush1.msra.mxu0 %v47
  %71 = vmatprep.subr.mxu0 0.0
  %72 = vmatpush1.msra.mxu0 %v46
  %73 = vmatprep.subr.mxu0 0.0
  %74 = vmatpush1.msra.mxu0 %v45
  %75 = vmatprep.subr.mxu0 0.0
  %76 = vmatpush1.msra.mxu0 %v44
  %77 = vmatprep.subr.mxu0 0.0
  %78 = vmatpush1.msra.mxu0 %v43
  %79 = vmatprep.subr.mxu0 0.0
  %80 = vmatpush1.msra.mxu0 %v42
  %81 = vmatprep.subr.mxu0 0.0
  %82 = vmatpush1.msra.mxu0 %v41
  %83 = vmatprep.subr.mxu0 0.0
  %84 = vmatpush1.msra.mxu0 %v40
  %85 = vmatprep.subr.mxu0 0.0
  %86 = vmatpush1.msra.mxu0 %v39
  %87 = vmatprep.subr.mxu0 0.0
  %88 = vmatpush1.msra.mxu0 %v38
  %89 = vmatprep.subr.mxu0 0.0
  %90 = vmatpush1.msra.mxu0 %v37
  %91 = vmatprep.subr.mxu0 0.0
  %92 = vmatpush1.msra.mxu0 %v36
  %93 = vmatprep.subr.mxu0 0.0
  %94 = vmatpush1.msra.mxu0 %v35
  %95 = vmatprep.subr.mxu0 0.0
  %96 = vmatpush1.msra.mxu0 %v34
  %97 = vmatprep.subr.mxu0 0.0
  %98 = vmatpush2.msra.mxu0 0.0
  %99 = vmatprep.subr.mxu0 0.0
  %100 = vmatpush2.msra.mxu0 0.0
  %101 = vmatprep.subr.mxu0 0.0
  %102 = vmatpush2.msra.mxu0 0.0
  %103 = vmatprep.subr.mxu0 0.0
  %104 = vmatpush2.msra.mxu0 0.0
  %105 = vmatprep.subr.mxu0 0.0
  %106 = vmatpush2.msra.mxu0 0.0
  %107 = vmatprep.subr.mxu0 0.0
  %108 = vmatpush2.msra.mxu0 0.0
  %109 = vmatprep.subr.mxu0 0.0
  %110 = vmatpush2.msra.mxu0 0.0
  %111 = vmatprep.subr.mxu0 0.0
  %112 = vmatpush2.msra.mxu0 0.0
  %113 = vmatprep.subr.mxu0 0.0
  %114 = vmatpush2.msra.mxu0 0.0
  %115 = vmatprep.subr.mxu0 0.0
  %116 = vmatpush2.msra.mxu0 0.0
  %117 = vmatprep.subr.mxu0 0.0
  %118 = vmatpush2.msra.mxu0 0.0
  %119 = vmatprep.subr.mxu0 0.0
  %120 = vmatpush2.msra.mxu0 0.0
  %121 = vmatprep.subr.mxu0 0.0
  %122 = vmatpush2.msra.mxu0 %v53
  %123 = vmatprep.subr.mxu0 0.0
  %124 = vmatpush2.msra.mxu0 %v52
  %125 = vmatprep.subr.mxu0 0.0
  %126 = vmatpush2.msra.mxu0 %v51
  %127 = vmatprep.subr.mxu0 0.0
  %128 = vmatpush2.msra.mxu0 %v50
  %129 = vmatprep.mubr.f32.mxu0 %v63
  %130 = vmatmul.mubr.f32.gmra.mxu0 %v32
  %v131 = vpop.f32.mrf.mxu0
  %v132 = vadd.f32 %v59, %v131
  %v133 = vpop.f32.mrf.mxu0
  %134 = vdwg.mxu0
  %v135 = vmax.f32 %v132, 0.0
  %v136 = vld [vmem:[%s3] sm:$0xff]
  %v137 = vld [vmem:[%s3 + $0x8] sm:$0xff]
  %v138 = vld [vmem:[%s3 + $0x10] sm:$0xff]
  %v139 = vld [vmem:[%s3 + $0x18] sm:$0xff]
  %v140 = vld [vmem:[%s3 + $0x20] sm:$0xff]
  %v141 = vld [vmem:[%s3 + $0x28] sm:$0xff]
  %v142 = vld [vmem:[%s3 + $0x30] sm:$0xff]
  %v143 = vld [vmem:[%s3 + $0x38] sm:$0xff]
  %v144 = vld [vmem:[%s3 + $0x40] sm:$0xff]
  %v145 = vld [vmem:[%s3 + $0x48] sm:$0xff]
  %v146 = vld [vmem:[%s3 + $0x50] sm:$0xff]
  %v147 = vld [vmem:[%s3 + $0x58] sm:$0xff]
  %v148 = vld [vmem:[%s3 + $0x60] sm:$0xff]
  %v149 = vld [vmem:[%s3 + $0x68] sm:$0xff]
  %v150 = vld [vmem:[%s3 + $0x70] sm:$0xff]
  %v151 = vld [vmem:[%s3 + $0x78] sm:$0xff]
  %v152 = vld [vmem:[%s4] sm:$0x1]
  %v154 = vlaneseq
  %v155 = vshrl.u32 %v154, 7
  %v156 = vsub.s32 0, %v155
  %v157 = vrot.slane %v152, %v156
  %159 = vmatprep.subr.mxu0 0.0
  %160 = vmatpush1.msra.mxu0 %v151
  %161 = vmatprep.subr.mxu0 0.0
  %162 = vmatpush1.msra.mxu0 %v150
  %163 = vmatprep.subr.mxu0 0.0
  %164 = vmatpush1.msra.mxu0 %v149
  %165 = vmatprep.subr.mxu0 0.0
  %166 = vmatpush1.msra.mxu0 %v148
  %167 = vmatprep.subr.mxu0 0.0
  %168 = vmatpush1.msra.mxu0 %v147
  %169 = vmatprep.subr.mxu0 0.0
  %170 = vmatpush1.msra.mxu0 %v146
  %171 = vmatprep.subr.mxu0 0.0
  %172 = vmatpush1.msra.mxu0 %v145
  %173 = vmatprep.subr.mxu0 0.0
  %174 = vmatpush1.msra.mxu0 %v144
  %175 = vmatprep.subr.mxu0 0.0
  %176 = vmatpush1.msra.mxu0 %v143
  %177 = vmatprep.subr.mxu0 0.0
  %178 = vmatpush1.msra.mxu0 %v142
  %179 = vmatprep.subr.mxu0 0.0
  %180 = vmatpush1.msra.mxu0 %v141
  %181 = vmatprep.subr.mxu0 0.0
  %182 = vmatpush1.msra.mxu0 %v140
  %183 = vmatprep.subr.mxu0 0.0
  %184 = vmatpush1.msra.mxu0 %v139
  %185 = vmatprep.subr.mxu0 0.0
  %186 = vmatpush1.msra.mxu0 %v138
  %187 = vmatprep.subr.mxu0 0.0
  %188 = vmatpush1.msra.mxu0 %v137
  %189 = vmatprep.subr.mxu0 0.0
  %190 = vmatpush1.msra.mxu0 %v136
  %191 = vmatprep.subr.mxu0 0.0
  %192 = vmatpush2.msra.mxu0 0.0
  %193 = vmatprep.subr.mxu0 0.0
  %194 = vmatpush2.msra.mxu0 0.0
  %195 = vmatprep.subr.mxu0 0.0
  %196 = vmatpush2.msra.mxu0 0.0
  %197 = vmatprep.subr.mxu0 0.0
  %198 = vmatpush2.msra.mxu0 0.0
  %199 = vmatprep.subr.mxu0 0.0
  %200 = vmatpush2.msra.mxu0 0.0
  %201 = vmatprep.subr.mxu0 0.0
  %202 = vmatpush2.msra.mxu0 0.0
  %203 = vmatprep.subr.mxu0 0.0
  %204 = vmatpush2.msra.mxu0 0.0
  %205 = vmatprep.subr.mxu0 0.0
  %206 = vmatpush2.msra.mxu0 0.0
  %207 = vmatprep.subr.mxu0 0.0
  %208 = vmatpush2.msra.mxu0 0.0
  %209 = vmatprep.subr.mxu0 0.0
  %210 = vmatpush2.msra.mxu0 0.0
  %211 = vmatprep.subr.mxu0 0.0
  %212 = vmatpush2.msra.mxu0 0.0
  %213 = vmatprep.subr.mxu0 0.0
  %214 = vmatpush2.msra.mxu0 0.0
  %215 = vmatprep.subr.mxu0 0.0
  %216 = vmatpush2.msra.mxu0 0.0
  %217 = vmatprep.subr.mxu0 0.0
  %218 = vmatpush2.msra.mxu0 0.0
  %219 = vmatprep.subr.mxu0 0.0
  %220 = vmatpush2.msra.mxu0 0.0
  %221 = vmatprep.subr.mxu0 0.0
  %222 = vmatpush2.msra.mxu0 0.0
  %223 = vmatprep.mubr.f32.mxu0 0.0
  %224 = vmatmul.mubr.f32.gmra.mxu0 %v135
  %v225 = vpop.f32.mrf.mxu0
  %v226 = vadd.f32 %v157, %v225
  %v227 = vpop.f32.mrf.mxu0
  %228 = vdwg.mxu0
  %v229 = vmax.f32 %v226, 0.0
  %v230 = vld [vmem:[%s5] sm:$0xff]
  %v231 = vld [vmem:[%s5 + $0x8] sm:$0xff]
  %v232 = vld [vmem:[%s5 + $0x10] sm:$0xff]
  %v233 = vld [vmem:[%s5 + $0x18] sm:$0xff]
  %v234 = vld [vmem:[%s5 + $0x20] sm:$0xff]
  %v235 = vld [vmem:[%s5 + $0x28] sm:$0xff]
  %v236 = vld [vmem:[%s5 + $0x30] sm:$0xff]
  %v237 = vld [vmem:[%s5 + $0x38] sm:$0xff]
  %v238 = vld [vmem:[%s5 + $0x40] sm:$0xff]
  %v239 = vld [vmem:[%s5 + $0x48] sm:$0xff]
  %v240 = vld [vmem:[%s5 + $0x50] sm:$0xff]
  %v241 = vld [vmem:[%s5 + $0x58] sm:$0xff]
  %v242 = vld [vmem:[%s5 + $0x60] sm:$0xff]
  %v243 = vld [vmem:[%s5 + $0x68] sm:$0xff]
  %v244 = vld [vmem:[%s5 + $0x70] sm:$0xff]
  %v245 = vld [vmem:[%s5 + $0x78] sm:$0xff]
  %v246 = vld [vmem:[%s6] sm:$0x1]
  %v248 = vlaneseq
  %v249 = vshrl.u32 %v248, 7
  %v250 = vsub.s32 0, %v249
  %v251 = vrot.slane %v246, %v250
  %253 = vmatprep.subr.mxu0 0.0
  %254 = vmatpush1.msra.mxu0 %v245
  %255 = vmatprep.subr.mxu0 0.0
  %256 = vmatpush1.msra.mxu0 %v244
  %257 = vmatprep.subr.mxu0 0.0
  %258 = vmatpush1.msra.mxu0 %v243
  %259 = vmatprep.subr.mxu0 0.0
  %260 = vmatpush1.msra.mxu0 %v242
  %261 = vmatprep.subr.mxu0 0.0
  %262 = vmatpush1.msra.mxu0 %v241
  %263 = vmatprep.subr.mxu0 0.0
  %264 = vmatpush1.msra.mxu0 %v240
  %265 = vmatprep.subr.mxu0 0.0
  %266 = vmatpush1.msra.mxu0 %v239
  %267 = vmatprep.subr.mxu0 0.0
  %268 = vmatpush1.msra.mxu0 %v238
  %269 = vmatprep.subr.mxu0 0.0
  %270 = vmatpush1.msra.mxu0 %v237
  %271 = vmatprep.subr.mxu0 0.0
  %272 = vmatpush1.msra.mxu0 %v236
  %273 = vmatprep.subr.mxu0 0.0
  %274 = vmatpush1.msra.mxu0 %v235
  %275 = vmatprep.subr.mxu0 0.0
  %276 = vmatpush1.msra.mxu0 %v234
  %277 = vmatprep.subr.mxu0 0.0
  %278 = vmatpush1.msra.mxu0 %v233
  %279 = vmatprep.subr.mxu0 0.0
  %280 = vmatpush1.msra.mxu0 %v232
  %281 = vmatprep.subr.mxu0 0.0
  %282 = vmatpush1.msra.mxu0 %v231
  %283 = vmatprep.subr.mxu0 0.0
  %284 = vmatpush1.msra.mxu0 %v230
  %285 = vmatprep.subr.mxu0 0.0
  %286 = vmatpush2.msra.mxu0 0.0
  %287 = vmatprep.subr.mxu0 0.0
  %288 = vmatpush2.msra.mxu0 0.0
  %289 = vmatprep.subr.mxu0 0.0
  %290 = vmatpush2.msra.mxu0 0.0
  %291 = vmatprep.subr.mxu0 0.0
  %292 = vmatpush2.msra.mxu0 0.0
  %293 = vmatprep.subr.mxu0 0.0
  %294 = vmatpush2.msra.mxu0 0.0
  %295 = vmatprep.subr.mxu0 0.0
  %296 = vmatpush2.msra.mxu0 0.0
  %297 = vmatprep.subr.mxu0 0.0
  %298 = vmatpush2.msra.mxu0 0.0
  %299 = vmatprep.subr.mxu0 0.0
  %300 = vmatpush2.msra.mxu0 0.0
  %301 = vmatprep.subr.mxu0 0.0
  %302 = vmatpush2.msra.mxu0 0.0
  %303 = vmatprep.subr.mxu0 0.0
  %304 = vmatpush2.msra.mxu0 0.0
  %305 = vmatprep.subr.mxu0 0.0
  %306 = vmatpush2.msra.mxu0 0.0
  %307 = vmatprep.subr.mxu0 0.0
  %308 = vmatpush2.msra.mxu0 0.0
  %309 = vmatprep.subr.mxu0 0.0
  %310 = vmatpush2.msra.mxu0 0.0
  %311 = vmatprep.subr.mxu0 0.0
  %312 = vmatpush2.msra.mxu0 0.0
  %313 = vmatprep.subr.mxu0 0.0
  %314 = vmatpush2.msra.mxu0 0.0
  %315 = vmatprep.subr.mxu0 0.0
  %316 = vmatpush2.msra.mxu0 0.0
  %317 = vmatprep.mubr.f32.mxu0 0.0
  %318 = vmatmul.mubr.f32.gmra.mxu0 %v229
  %v319 = vpop.f32.mrf.mxu0
  %v320 = vadd.f32 %v251, %v319
  %v321 = vpop.f32.mrf.mxu0
  %322 = vdwg.mxu0
  %v323 = vmax.f32 %v320, 0.0
  %v324 = vld [vmem:[%s7] sm:$0xff]
  %v325 = vld [vmem:[%s7 + $0x8] sm:$0xff]
  %v326 = vld [vmem:[%s7 + $0x10] sm:$0xff]
  %v327 = vld [vmem:[%s7 + $0x18] sm:$0xff]
  %v328 = vld [vmem:[%s7 + $0x20] sm:$0xff]
  %v329 = vld [vmem:[%s7 + $0x28] sm:$0xff]
  %v330 = vld [vmem:[%s7 + $0x30] sm:$0xff]
  %v331 = vld [vmem:[%s7 + $0x38] sm:$0xff]
  %v332 = vld [vmem:[%s7 + $0x40] sm:$0xff]
  %v333 = vld [vmem:[%s7 + $0x48] sm:$0xff]
  %v334 = vld [vmem:[%s7 + $0x50] sm:$0xff]
  %v335 = vld [vmem:[%s7 + $0x58] sm:$0xff]
  %v336 = vld [vmem:[%s7 + $0x60] sm:$0xff]
  %v337 = vld [vmem:[%s7 + $0x68] sm:$0xff]
  %v338 = vld [vmem:[%s7 + $0x70] sm:$0xff]
  %v339 = vld [vmem:[%s7 + $0x78] sm:$0xff]
  %v340 = vld [vmem:[%s8] sm:$0x1]
  %v342 = vlaneseq
  %v343 = vshrl.u32 %v342, 7
  %v344 = vsub.s32 0, %v343
  %v345 = vrot.slane %v340, %v344
  %347 = vmatprep.subr.mxu0 0.0
  %348 = vmatpush1.msra.mxu0 %v339
  %349 = vmatprep.subr.mxu0 0.0
  %350 = vmatpush1.msra.mxu0 %v338
  %351 = vmatprep.subr.mxu0 0.0
  %352 = vmatpush1.msra.mxu0 %v337
  %353 = vmatprep.subr.mxu0 0.0
  %354 = vmatpush1.msra.mxu0 %v336
  %355 = vmatprep.subr.mxu0 0.0
  %356 = vmatpush1.msra.mxu0 %v335
  %357 = vmatprep.subr.mxu0 0.0
  %358 = vmatpush1.msra.mxu0 %v334
  %359 = vmatprep.subr.mxu0 0.0
  %360 = vmatpush1.msra.mxu0 %v333
  %361 = vmatprep.subr.mxu0 0.0
  %362 = vmatpush1.msra.mxu0 %v332
  %363 = vmatprep.subr.mxu0 0.0
  %364 = vmatpush1.msra.mxu0 %v331
  %365 = vmatprep.subr.mxu0 0.0
  %366 = vmatpush1.msra.mxu0 %v330
  %367 = vmatprep.subr.mxu0 0.0
  %368 = vmatpush1.msra.mxu0 %v329
  %369 = vmatprep.subr.mxu0 0.0
  %370 = vmatpush1.msra.mxu0 %v328
  %371 = vmatprep.subr.mxu0 0.0
  %372 = vmatpush1.msra.mxu0 %v327
  %373 = vmatprep.subr.mxu0 0.0
  %374 = vmatpush1.msra.mxu0 %v326
  %375 = vmatprep.subr.mxu0 0.0
  %376 = vmatpush1.msra.mxu0 %v325
  %377 = vmatprep.subr.mxu0 0.0
  %378 = vmatpush1.msra.mxu0 %v324
  %379 = vmatprep.subr.mxu0 0.0
  %380 = vmatpush2.msra.mxu0 0.0
  %381 = vmatprep.subr.mxu0 0.0
  %382 = vmatpush2.msra.mxu0 0.0
  %383 = vmatprep.subr.mxu0 0.0
  %384 = vmatpush2.msra.mxu0 0.0
  %385 = vmatprep.subr.mxu0 0.0
  %386 = vmatpush2.msra.mxu0 0.0
  %387 = vmatprep.subr.mxu0 0.0
  %388 = vmatpush2.msra.mxu0 0.0
  %389 = vmatprep.subr.mxu0 0.0
  %390 = vmatpush2.msra.mxu0 0.0
  %391 = vmatprep.subr.mxu0 0.0
  %392 = vmatpush2.msra.mxu0 0.0
  %393 = vmatprep.subr.mxu0 0.0
  %394 = vmatpush2.msra.mxu0 0.0
  %395 = vmatprep.subr.mxu0 0.0
  %396 = vmatpush2.msra.mxu0 0.0
  %397 = vmatprep.subr.mxu0 0.0
  %398 = vmatpush2.msra.mxu0 0.0
  %399 = vmatprep.subr.mxu0 0.0
  %400 = vmatpush2.msra.mxu0 0.0
  %401 = vmatprep.subr.mxu0 0.0
  %402 = vmatpush2.msra.mxu0 0.0
  %403 = vmatprep.subr.mxu0 0.0
  %404 = vmatpush2.msra.mxu0 0.0
  %405 = vmatprep.subr.mxu0 0.0
  %406 = vmatpush2.msra.mxu0 0.0
  %407 = vmatprep.subr.mxu0 0.0
  %408 = vmatpush2.msra.mxu0 0.0
  %409 = vmatprep.subr.mxu0 0.0
  %410 = vmatpush2.msra.mxu0 0.0
  %411 = vmatprep.mubr.f32.mxu0 0.0
  %412 = vmatmul.mubr.f32.gmra.mxu0 %v323
  %v413 = vpop.f32.mrf.mxu0
  %v414 = vadd.f32 %v345, %v413
  %v415 = vpop.f32.mrf.mxu0
  %416 = vdwg.mxu0
  %vm417 = vcmask 130048
  %418 = vst.msk [vmem:[%s9] sm:$0xff] %vm417, %v414
  // Predicated region
  $region38: #{model_forward.1} parent=0 // pred_check
    _
  $region39: #{model_forward.1} parent=0 // pred_check_branch
    %420 = sbr.rel (0) target = $region41
  $region40: #{model_forward.1} parent=0 // pred_region
    _
  $region41: #{model_forward.1} parent=0 // pred_fallthru
    _
  // Predicated region
  $region42: #{model_forward.1} parent=0 // pred_check
    _
  $region43: #{model_forward.1} parent=0 // pred_check_branch
    %422 = sbr.rel (0) target = $region45
  $region44: #{model_forward.1} parent=0 // pred_region
    _
  $region45: #{model_forward.1} parent=0 // pred_fallthru
    _

</llo_original>
